<compile_context>
chip_gen: v6e
topology: v6e:2x2x1
jax: 0.10.0
libtpu: 0.0.40
codegen_flags: <defaults>
</compile_context>

<pallas_src>
import functools

import jax
import jax.numpy as jnp
from jax.experimental import pallas as pl
from jax.experimental.pallas import tpu as pltpu


# ----------------------------------------------------------------------------
# Pallas kernel: one fused (nb*H, KH*W*Cin) @ (KH*W*Cin, W*Cout) matmul
# ----------------------------------------------------------------------------
def _conv_fused_kernel(x_ref, m_ref, b_ref, o_ref, *, nb, H, K0):
    # x_ref: (nb, H, W*Cin)            unpadded NHWC input, (W, Cin) folded to lanes
    # m_ref: (KH*W*Cin, W*Cout)        fused banded conv matrix (dh/dw/ci/co folded)
    # b_ref: (1, W*Cout)               lane-dense bias row (f32)
    # o_ref: (nb*H, W*Cout)            lane-dense output slab (f32)
    xb = x_ref[...]                                            # (nb, H, K0) bf16
    zrow = jnp.zeros((nb, 1, K0), xb.dtype)
    up = jnp.concatenate([zrow, xb[:, :H - 1, :]], axis=1)     # row h <- x[h-1]  (dh=0)
    down = jnp.concatenate([xb[:, 1:, :], zrow], axis=1)       # row h <- x[h+1]  (dh=2)
    lhs = jnp.concatenate([up, xb, down], axis=-1)             # (nb, H, 3*K0)
    lhs2d = lhs.reshape(nb * H, 3 * K0)
    acc = jnp.dot(lhs2d, m_ref[...], preferred_element_type=jnp.float32)
    o_ref[...] = (acc + b_ref[...]).astype(o_ref.dtype)


# ----------------------------------------------------------------------------
# Conv2d(Cin, Cout, 3x3, stride=1, padding=1) via the Pallas kernel
# ----------------------------------------------------------------------------
def conv2d_same_pallas(x_nchw, weight, bias):
    N, Cin, H, W = x_nchw.shape
    Cout, Cin_w, KH, KW = weight.shape
    assert Cin_w == Cin
    pad_h, pad_w = KH // 2, KW // 2
    K0 = W * Cin          # per-tap reduction width (64 here)
    Kf = KH * K0          # fused matmul K          (192 here)
    L = W * Cout          # lane-dense output width (128 here)

    # ---- glue: NCHW -> NHWC, fold (W, Cin) into lanes; bf16 operands ----
    x_nhwc = jnp.transpose(x_nchw, (0, 2, 3, 1))               # [N, H, W, Cin]
    x3d = x_nhwc.reshape(N, H, K0).astype(jnp.bfloat16)        # [N, H, W*Cin]

    # ---- fold 3x3 weights + W zero-padding into one banded matrix (Kf, L) ----
    # m[dh*K0 + w_in*Cin + ci, w*Cout + co] = weight[co, ci, dh, dw]
    #   for w_in = w + dw - pad_w in range; out-of-range taps are absent (== 0 pad).
    wt = jnp.transpose(weight, (2, 3, 1, 0)).astype(jnp.float32)   # [KH,KW,Cin,Cout]
    m_blocks = []
    for dh in range(KH):
        m_dh = jnp.zeros((K0, L), jnp.float32)
        for dw in range(KW):
            sel = jnp.eye(W, W, k=pad_w - dw, dtype=jnp.float32)   # sel[w_in, w]
            m_dh = m_dh + jnp.einsum('iw,cd->icwd', sel, wt[dh, dw]).reshape(K0, L)
        m_blocks.append(m_dh)
    m_fused = jnp.concatenate(m_blocks, axis=0).astype(jnp.bfloat16)   # [Kf, L]
    bias_row = jnp.tile(bias.astype(jnp.float32), W).reshape(1, L)

    # ---- batch blocking: target ~256 output rows / block, grid >= 2 if N > 1 ----
    per_img = H * K0 * 2 * 2 + H * L * 4 * 2 + H * Kf * 4   # dbl-buf x/out + lhs temp
    budget = 8 * 1024 * 1024                                 # safe under v7x scoped VMEM
    nb = max(1, min(N, max(1, 256 // max(H, 1))))
    while nb > 1 and nb * per_img > budget:
        nb -= 1
    if N > 1 and -(-N // nb) < 2:
        nb = (N + 1) // 2          # v7x: >= 2 grid steps so both TensorCores work
    if (nb * H) % 8 != 0:
        nb = N                     # fall back to a single full block (rare odd-H case)
    n_pad = (-N) % nb              # never degrade nb: pad the batch instead
    if n_pad:
        x3d = jnp.pad(x3d, ((0, n_pad), (0, 0), (0, 0)))
    Npad = N + n_pad
    grid = (Npad // nb,)

    kernel = functools.partial(_conv_fused_kernel, nb=nb, H=H, K0=K0)

    out2d = pl.pallas_call(
        kernel,
        out_shape=jax.ShapeDtypeStruct((Npad * H, L), jnp.float32),
        grid_spec=pltpu.PrefetchScalarGridSpec(
            num_scalar_prefetch=0,
            grid=grid,
            in_specs=[
                pl.BlockSpec((nb, H, K0), lambda i: (i, 0, 0)),    # input slab
                pl.BlockSpec((Kf, L), lambda i: (0, 0)),           # fused conv matrix
                pl.BlockSpec((1, L), lambda i: (0, 0)),            # lane-dense bias
            ],
            out_specs=pl.BlockSpec((nb * H, L), lambda i: (i, 0)),
        ),
        compiler_params=pltpu.CompilerParams(
            dimension_semantics=("parallel",)),
    )(x3d, m_fused, bias_row)

    feature_nhwc = out2d[:N * H].reshape(N, H, W, Cout)
    return jnp.transpose(feature_nhwc, (0, 3, 1, 2))               # [N, Cout, H, W]


# ----------------------------------------------------------------------------
# Feature_extractor forward (lay = Conv2d(4, 8, 3, padding=1))
# ----------------------------------------------------------------------------
def feature_extractor_forward(x_nchw, weight, bias):
    """Mirrors Feature_extractor.forward: returns (X_unchanged, feature)."""
    feature = conv2d_same_pallas(x_nchw, weight, bias)
    return x_nchw, feature


if __name__ == "__main__":
    key = jax.random.PRNGKey(0)
    kx, kw, kb = jax.random.split(key, 3)

    N, Cin, H, W = 2, 4, 16, 16
    Cout, KH, KW = 8, 3, 3

    x = jax.random.normal(kx, (N, Cin, H, W), dtype=jnp.float32)
    weight = jax.random.normal(kw, (Cout, Cin, KH, KW), dtype=jnp.float32) * 0.1
    bias = jax.random.normal(kb, (Cout,), dtype=jnp.float32) * 0.1

    y, feature = jax.jit(feature_extractor_forward)(x, weight, bias)
    jax.block_until_ready((y, feature))

    # forward() must return X unchanged
    assert jnp.array_equal(y, x)

    # Tight check: reference conv on bf16-rounded operands (matches kernel's
    # bf16 operands / f32 accumulation up to summation order).
    xr = x.astype(jnp.bfloat16).astype(jnp.float32)
    wr = weight.astype(jnp.bfloat16).astype(jnp.float32)
    ref_bf16 = jax.lax.conv_general_dilated(
        xr, wr, window_strides=(1, 1), padding="SAME",
        dimension_numbers=("NCHW", "OIHW", "NCHW")) + bias.reshape(1, Cout, 1, 1)
    assert jnp.allclose(feature, ref_bf16, atol=1e-3, rtol=1e-3)

    # Loose semantic check against the full-precision conv.
    ref_f32 = jax.lax.conv_general_dilated(
        x, weight, window_strides=(1, 1), padding="SAME",
        dimension_numbers=("NCHW", "OIHW", "NCHW")) + bias.reshape(1, Cout, 1, 1)
    assert jnp.allclose(feature, ref_f32, atol=3e-2, rtol=3e-2)

    print("KERNEL_OK")
</pallas_src>

<mosaic_0001>
module attributes {stable_mosaic.version = 11 : i64} {
  func.func @_conv_fused_kernel(%arg0: i32, %arg1: memref<1x16x64xbf16, #tpu.memory_space<vmem>>, %arg2: memref<192x128xbf16, #tpu.memory_space<vmem>>, %arg3: memref<1x128xf32, #tpu.memory_space<vmem>>, %arg4: memref<16x128xf32, #tpu.memory_space<vmem>>) attributes {dimension_semantics = [#tpu.dimension_semantics<parallel>], iteration_bounds = array<i64: 2>, scalar_prefetch = 0 : i64, scratch_operands = 0 : i64, tpu.core_type = #tpu.core_type<tc>, window_params = [{transform_indices = @transform_0, window_bounds = array<i64: 1, 16, 64>}, {pipeline_mode = #tpu.pipeline_mode<synchronous>, transform_indices = @transform_1, window_bounds = array<i64: 192, 128>}, {pipeline_mode = #tpu.pipeline_mode<synchronous>, transform_indices = @transform_2, window_bounds = array<i64: 1, 128>}, {transform_indices = @transform_3, window_bounds = array<i64: 16, 128>}]} {
    %c0 = arith.constant 0 : index
    %c0_0 = arith.constant 0 : index
    %c0_1 = arith.constant 0 : index
    %0 = vector.load %arg1[%c0, %c0_0, %c0_1] : memref<1x16x64xbf16, #tpu.memory_space<vmem>>, vector<1x16x64xbf16>
    %cst = arith.constant 0.000000e+00 : bf16
    %1 = vector.broadcast %cst : bf16 to vector<1x1x64xbf16>
    %2 = vector.extract_strided_slice %0 {offsets = [0, 0, 0], sizes = [1, 15, 64], strides = [1, 1, 1]} : vector<1x16x64xbf16> to vector<1x15x64xbf16>
    %3 = tpu.concatenate %1, %2 in 1 : vector<1x1x64xbf16>, vector<1x15x64xbf16> -> vector<1x16x64xbf16>
    %4 = vector.extract_strided_slice %0 {offsets = [0, 1, 0], sizes = [1, 15, 64], strides = [1, 1, 1]} : vector<1x16x64xbf16> to vector<1x15x64xbf16>
    %5 = tpu.concatenate %4, %1 in 1 : vector<1x15x64xbf16>, vector<1x1x64xbf16> -> vector<1x16x64xbf16>
    %6 = tpu.concatenate %3, %0, %5 in 2 : vector<1x16x64xbf16>, vector<1x16x64xbf16>, vector<1x16x64xbf16> -> vector<1x16x192xbf16>
    %7 = vector.shape_cast %6 : vector<1x16x192xbf16> to vector<16x192xbf16>
    %c0_2 = arith.constant 0 : index
    %c0_3 = arith.constant 0 : index
    %8 = vector.load %arg2[%c0_2, %c0_3] : memref<192x128xbf16, #tpu.memory_space<vmem>>, vector<192x128xbf16>
    %cst_4 = arith.constant dense<0.000000e+00> : vector<16x128xf32>
    %9 = tpu.matmul %7, %8, %cst_4 {dimension_numbers = #tpu.dot_dimension_numbers<[1], [0], [0], [1], [0, 0, 1, 1], [], []>} : vector<16x192xbf16>, vector<192x128xbf16>, vector<16x128xf32> -> vector<16x128xf32>
    %c0_5 = arith.constant 0 : index
    %c0_6 = arith.constant 0 : index
    %10 = vector.load %arg3[%c0_5, %c0_6] : memref<1x128xf32, #tpu.memory_space<vmem>>, vector<1x128xf32>
    %11 = vector.broadcast %10 : vector<1x128xf32> to vector<16x128xf32>
    %12 = arith.addf %9, %11 : vector<16x128xf32>
    %c0_7 = arith.constant 0 : index
    %c0_8 = arith.constant 0 : index
    %13 = vector.load %arg4[%c0_7, %c0_8] : memref<16x128xf32, #tpu.memory_space<vmem>>, vector<16x128xf32>
    tpu.vector_store %arg4[%c0_7, %c0_8], %12 {strides = array<i32>} : memref<16x128xf32, #tpu.memory_space<vmem>>, vector<16x128xf32>,
    return
  }
  func.func @transform_0(%arg0: i32) -> (i32, i32, i32) {
    %c0_i32 = arith.constant 0 : i32
    %c0_i32_0 = arith.constant 0 : i32
    %c0_i32_1 = arith.constant 0 : i32
    return %arg0, %c0_i32, %c0_i32_0 : i32, i32, i32
  }
  func.func @transform_1(%arg0: i32) -> (i32, i32) {
    %c0_i32 = arith.constant 0 : i32
    %c0_i32_0 = arith.constant 0 : i32
    %c0_i32_1 = arith.constant 0 : i32
    return %c0_i32, %c0_i32_0 : i32, i32
  }
  func.func @transform_2(%arg0: i32) -> (i32, i32) {
    %c0_i32 = arith.constant 0 : i32
    %c0_i32_0 = arith.constant 0 : i32
    %c0_i32_1 = arith.constant 0 : i32
    return %c0_i32, %c0_i32_0 : i32, i32
  }
  func.func @transform_3(%arg0: i32) -> (i32, i32) {
    %c0_i32 = arith.constant 0 : i32
    %c0_i32_0 = arith.constant 0 : i32
    return %arg0, %c0_i32 : i32, i32
  }
}

</mosaic_0001>

<llo_original>
// kernel: tile.8
$region0: #{tile.8}
  #allocation0 [shape = 's32[1]{0}', space=sflag, size = 0x4, scoped, tag = 'scoped memory for tile.8']
  %s0 = inlined_call_operand.vmem [shape: f32[8], index: 0, kind: input, shape index: {}]
  %s1 = inlined_call_operand.vmem [shape: f32[16,8], index: 1, kind: output, shape index: {}]
  // Predicated region
  $region2: #{tile.8} parent=0 // pred_check
    _
  $region3: #{tile.8} parent=0 // pred_check_branch
    %3 = sbr.rel (0) target = $region5
  $region4: #{tile.8} parent=0 // pred_region
    _
  $region5: #{tile.8} parent=0 // pred_fallthru
    _
  %v4 = vld [vmem:[%s0] ss:$0 sm:$0xff]
  %5 = vst [vmem:[%s1] sm:$0xff] %v4
  %s6 = scalar_lea.vmem %s1, 8
  %7 = vst [vmem:[%s6] sm:$0xff] %v4

// kernel: tile.9
$region0: #{tile.9}
  %s0 = inlined_call_operand.vmem [shape: f32[16,8], index: 0, kind: input, shape index: {}]
  %s1 = inlined_call_operand.vmem [shape: f32[1,128], index: 1, kind: output, shape index: {}]
  $region1: #{tile.9} parent=0
    #allocation0 [shape = 'u8[4096]{0}', space=vmem, size = 0x1000, scoped, tag = 'scoped mem for output reshape']
    %v2 = vld [vmem:[%s0] sm:$0x1]
    %vm3 = vcmask 64512
    %4 = vst.msk [vmem:[#allocation0] sm:$0x1] %vm3, %v2
    %s5 = scalar_lea.vmem %s0, 15
    %v6 = vld [vmem:[%s5] sm:$0x1]
    %7 = vrot.lane.b32.xlu0 %v6, 120
    %v8 = vpop.permute.xlu0 %7
    %vm9 = vcmask 1048512
    %10 = vst.msk [vmem:[#allocation0] sm:$0x1] %vm9, %v8
    %s11 = scalar_lea.vmem %s0, 14
    %v12 = vld [vmem:[%s11] sm:$0x1]
    %13 = vrot.lane.b32.xlu0 %v12, 112
    %v14 = vpop.permute.xlu0 %13
    %vm15 = vcmask 982912
    %16 = vst.msk [vmem:[#allocation0] sm:$0x1] %vm15, %v14
    %s17 = scalar_lea.vmem %s0, 13
    %v18 = vld [vmem:[%s17] sm:$0x1]
    %19 = vrot.lane.b32.xlu0 %v18, 104
    %v20 = vpop.permute.xlu0 %19
    %vm21 = vcmask 917312
    %22 = vst.msk [vmem:[#allocation0] sm:$0x1] %vm21, %v20
    %s23 = scalar_lea.vmem %s0, 12
    %v24 = vld [vmem:[%s23] sm:$0x1]
    %25 = vrot.lane.b32.xlu0 %v24, 96
    %v26 = vpop.permute.xlu0 %25
    %vm27 = vcmask 851712
    %28 = vst.msk [vmem:[#allocation0] sm:$0x1] %vm27, %v26
    %s29 = scalar_lea.vmem %s0, 11
    %v30 = vld [vmem:[%s29] sm:$0x1]
    %31 = vrot.lane.b32.xlu0 %v30, 88
    %v32 = vpop.permute.xlu0 %31
    %vm33 = vcmask 786112
    %34 = vst.msk [vmem:[#allocation0] sm:$0x1] %vm33, %v32
    %s35 = scalar_lea.vmem %s0, 10
    %v36 = vld [vmem:[%s35] sm:$0x1]
    %37 = vrot.lane.b32.xlu0 %v36, 80
    %v38 = vpop.permute.xlu0 %37
    %vm39 = vcmask 720512
    %40 = vst.msk [vmem:[#allocation0] sm:$0x1] %vm39, %v38
    %s41 = scalar_lea.vmem %s0, 9
    %v42 = vld [vmem:[%s41] sm:$0x1]
    %43 = vrot.lane.b32.xlu0 %v42, 72
    %v44 = vpop.permute.xlu0 %43
    %vm45 = vcmask 654912
    %46 = vst.msk [vmem:[#allocation0] sm:$0x1] %vm45, %v44
    %s47 = scalar_lea.vmem %s0, 8
    %v48 = vld [vmem:[%s47] sm:$0x1]
    %49 = vrot.lane.b32.xlu0 %v48, 64
    %v50 = vpop.permute.xlu0 %49
    %vm51 = vcmask 589312
    %52 = vst.msk [vmem:[#allocation0] sm:$0x1] %vm51, %v50
    %s53 = scalar_lea.vmem %s0, 7
    %v54 = vld [vmem:[%s53] sm:$0x1]
    %55 = vrot.lane.b32.xlu0 %v54, 56
    %v56 = vpop.permute.xlu0 %55
    %vm57 = vcmask 523712
    %58 = vst.msk [vmem:[#allocation0] sm:$0x1] %vm57, %v56
    %s59 = scalar_lea.vmem %s0, 6
    %v60 = vld [vmem:[%s59] sm:$0x1]
    %61 = vrot.lane.b32.xlu0 %v60, 48
    %v62 = vpop.permute.xlu0 %61
    %vm63 = vcmask 458112
    %64 = vst.msk [vmem:[#allocation0] sm:$0x1] %vm63, %v62
    %s65 = scalar_lea.vmem %s0, 5
    %v66 = vld [vmem:[%s65] sm:$0x1]
    %67 = vrot.lane.b32.xlu0 %v66, 40
    %v68 = vpop.permute.xlu0 %67
    %vm69 = vcmask 392512
    %70 = vst.msk [vmem:[#allocation0] sm:$0x1] %vm69, %v68
    %s71 = scalar_lea.vmem %s0, 4
    %v72 = vld [vmem:[%s71] sm:$0x1]
    %73 = vrot.lane.b32.xlu0 %v72, 32
    %v74 = vpop.permute.xlu0 %73
    %vm75 = vcmask 326912
    %76 = vst.msk [vmem:[#allocation0] sm:$0x1] %vm75, %v74
    %s77 = scalar_lea.vmem %s0, 3
    %v78 = vld [vmem:[%s77] sm:$0x1]
    %79 = vrot.lane.b32.xlu0 %v78, 24
    %v80 = vpop.permute.xlu0 %79
    %vm81 = vcmask 261312
    %82 = vst.msk [vmem:[#allocation0] sm:$0x1] %vm81, %v80
    %s83 = scalar_lea.vmem %s0, 2
    %v84 = vld [vmem:[%s83] sm:$0x1]
    %85 = vrot.lane.b32.xlu0 %v84, 16
    %v86 = vpop.permute.xlu0 %85
    %vm87 = vcmask 195712
    %88 = vst.msk [vmem:[#allocation0] sm:$0x1] %vm87, %v86
    %s89 = scalar_lea.vmem %s0, 1
    %v90 = vld [vmem:[%s89] sm:$0x1]
    %91 = vrot.lane.b32.xlu0 %v90, 8
    %v92 = vpop.permute.xlu0 %91
    %vm93 = vcmask 130112
    %94 = vst.msk [vmem:[#allocation0] sm:$0x1] %vm93, %v92
    %s96 = sshll.u32 1, 1
    %s97 = ssub.s32 %s96, 1
    %v99 = vld [vmem:[#allocation0] sm:%s97]
    %s100 = sshll.u32 1, 1
    %s101 = ssub.s32 %s100, 1
    %102 = vst [vmem:[%s1] sm:%s101] %v99

// kernel: feature_extractor_forward.1
$region0: #{feature_extractor_forward.1}
  #allocation0 [shape = 'u32[]', space=smem, size = 0x4, offset = 0x4, fixed_abs, tag = 'smem constant byte address 0x4 - core index']
  #allocation1 [shape = 'u32[144,128]{1,0:T(1,128)}', space=vmem, size = 0x12000, scoped, tag = 'internal scratch']
  %s0 = inlined_call_operand.vmem [shape: bf16[2,16,64], index: 0, kind: input, shape index: {}]
  %s1 = inlined_call_operand.vmem [shape: bf16[192,128], index: 1, kind: input, shape index: {}]
  %s2 = inlined_call_operand.vmem [shape: f32[1,128], index: 2, kind: input, shape index: {}]
  %s3 = inlined_call_operand.vmem [shape: f32[32,128], index: 3, kind: output, shape index: {}]
  %s4 = sld [smem:[#allocation0]]
  $region45: #{feature_extractor_forward.1} parent=0
    _
  %s6 = ssub.s32 1, %s4
  %s7 = scalar_select 0, %s6, %s4
  loop: start=0, step=1, limit=4
  $region2: #{feature_extractor_forward.1} parent=0 // loop_pre_header
    _
  $region3: #{feature_extractor_forward.1} parent=0 // loop_header
    %s9 = sphi 0, %s13
    %p10 = scmp.ge.s32.totalorder %s9, 4
    %s19 = sphi 0, %s21
    %s22 = sphi 0, %s19
    %s23 = sphi 0, %s22
    %s39 = sphi 0, %s23
    %s43 = sphi 0, %s43
    %s45 = sphi 0, %s43
    %s46 = sphi 0, %s45
    %s60 = sphi 0, %s46
    %s64 = sphi 0, %s64
    %s66 = sphi 0, %s64
    %s67 = sphi 0, %s66
    %s81 = sphi 0, %s67
    %s87 = sphi 0, %s89
    %s90 = sphi 0, %s87
    %s91 = sphi 0, %s90
    %s107 = sphi 0, %s91
  $region4: #{feature_extractor_forward.1} parent=0 // loop_header_branch
    %12 = sbr.rel (%p10) target = $region8
  $region5: #{feature_extractor_forward.1} parent=0 // loop_body
    %s14 = ssub.s32 %s9, 1
    %s15 = ssub.s32 %s9, 2
    %s16 = sadd.s32 %s9, 1
    %s17 = ssub.s32 %s9, %s16
    %p18 = scmp.eq.s32.totalorder %s17, 0
    %s20 = sadd.s32 %s19, 1
    %s21 = scalar_select %p18, %s19, %s20
    %p24 = pneg %p18
    %p25 = scmp.eq.s32.totalorder %s9, 1
    %p26 = por %p24, %p25
    %p27 = scmp.ne.s32.totalorder %s19, %s22
    %p28 = scmp.eq.s32.totalorder %s9, 0
    %p29 = por %p27, %p28
    %p30 = scmp.ne.s32.totalorder %s19, %s22
    %p31 = scmp.eq.s32.totalorder %s14, 1
    %p32 = por %p30, %p31
    %p33 = scmp.ne.s32.totalorder %s22, %s23
    %p34 = scmp.eq.s32.totalorder %s14, 0
    %p35 = por %p33, %p34
    %p36 = scmp.ne.s32.totalorder %s22, %s23
    %p37 = scmp.eq.s32.totalorder %s15, 1
    %p38 = por %p36, %p37
    %p40 = scmp.ne.s32.totalorder %s23, %s39
    %p41 = scmp.eq.s32.totalorder %s15, 0
    %p42 = por %p40, %p41
    %s44 = sadd.s32 %s43, 1
    %p47 = scmp.eq.s32.totalorder %s9, 1
    %p48 = scmp.ne.s32.totalorder %s43, %s45
    %p49 = scmp.eq.s32.totalorder %s9, 0
    %p50 = por %p48, %p49
    %p51 = scmp.ne.s32.totalorder %s43, %s45
    %p52 = scmp.eq.s32.totalorder %s14, 1
    %p53 = por %p51, %p52
    %p54 = scmp.ne.s32.totalorder %s45, %s46
    %p55 = scmp.eq.s32.totalorder %s14, 0
    %p56 = por %p54, %p55
    %p57 = scmp.ne.s32.totalorder %s45, %s46
    %p58 = scmp.eq.s32.totalorder %s15, 1
    %p59 = por %p57, %p58
    %p61 = scmp.ne.s32.totalorder %s46, %s60
    %p62 = scmp.eq.s32.totalorder %s15, 0
    %p63 = por %p61, %p62
    %s65 = sadd.s32 %s64, 1
    %p68 = scmp.eq.s32.totalorder %s9, 1
    %p69 = scmp.ne.s32.totalorder %s64, %s66
    %p70 = scmp.eq.s32.totalorder %s9, 0
    %p71 = por %p69, %p70
    %p72 = scmp.ne.s32.totalorder %s64, %s66
    %p73 = scmp.eq.s32.totalorder %s14, 1
    %p74 = por %p72, %p73
    %p75 = scmp.ne.s32.totalorder %s66, %s67
    %p76 = scmp.eq.s32.totalorder %s14, 0
    %p77 = por %p75, %p76
    %p78 = scmp.ne.s32.totalorder %s66, %s67
    %p79 = scmp.eq.s32.totalorder %s15, 1
    %p80 = por %p78, %p79
    %p82 = scmp.ne.s32.totalorder %s67, %s81
    %p83 = scmp.eq.s32.totalorder %s15, 0
    %p84 = por %p82, %p83
    %s85 = ssub.s32 %s9, %s16
    %p86 = scmp.eq.s32.totalorder %s85, 0
    %s88 = sadd.s32 %s87, 1
    %s89 = scalar_select %p86, %s87, %s88
    %p92 = pneg %p86
    %p93 = scmp.eq.s32.totalorder %s9, 1
    %p94 = por %p92, %p93
    %p95 = scmp.ne.s32.totalorder %s87, %s90
    %p96 = scmp.eq.s32.totalorder %s9, 0
    %p97 = por %p95, %p96
    %p98 = scmp.ne.s32.totalorder %s87, %s90
    %p99 = scmp.eq.s32.totalorder %s14, 1
    %p100 = por %p98, %p99
    %p101 = scmp.ne.s32.totalorder %s90, %s91
    %p102 = scmp.eq.s32.totalorder %s14, 0
    %p103 = por %p101, %p102
    %p104 = scmp.ne.s32.totalorder %s90, %s91
    %p105 = scmp.eq.s32.totalorder %s15, 1
    %p106 = por %p104, %p105
    %p108 = scmp.ne.s32.totalorder %s91, %s107
    %p109 = scmp.eq.s32.totalorder %s15, 0
    %p110 = por %p108, %p109
    %p111 = scmp.le.s32.totalorder 1, %s9
    %p112 = scmp.lt.s32.totalorder %s9, 3
    %p113 = pnand %p111, %p112
    %p114 = pneg %p113
    // Predicated region
    $region9: #{feature_extractor_forward.1} parent=5 // pred_check
      _
    $region10: #{feature_extractor_forward.1} parent=5 // pred_check_branch
      %116 = sbr.rel (%p113) target = $region12
    $region11: #{feature_extractor_forward.1} parent=5 // pred_region
      %s117 = ssub.s32 %s9, 1
      // Predicated region
      $region13: #{feature_extractor_forward.1} parent=11 // pred_check
        %p118 = pneg %p56
      $region14: #{feature_extractor_forward.1} parent=11 // pred_check_branch
        %120 = sbr.rel (%p118) target = $region16
      $region15: #{feature_extractor_forward.1} parent=11 // pred_region
        _
      $region16: #{feature_extractor_forward.1} parent=11 // pred_fallthru
        _
      // Predicated region
      $region17: #{feature_extractor_forward.1} parent=11 // pred_check
        %p121 = pneg %p77
      $region18: #{feature_extractor_forward.1} parent=11 // pred_check_branch
        %123 = sbr.rel (%p121) target = $region20
      $region19: #{feature_extractor_forward.1} parent=11 // pred_region
        _
      $region20: #{feature_extractor_forward.1} parent=11 // pred_fallthru
        _
    $region12: #{feature_extractor_forward.1} parent=5 // pred_fallthru
      _
    %p124 = scmp.lt.s32.totalorder %s9, 2
    // Predicated region
    $region21: #{feature_extractor_forward.1} parent=5 // pred_check
      %p125 = pneg %p124
    $region22: #{feature_extractor_forward.1} parent=5 // pred_check_branch
      %127 = sbr.rel (%p125) target = $region24
    $region23: #{feature_extractor_forward.1} parent=5 // pred_region
      // Predicated region
      $region25: #{feature_extractor_forward.1} parent=23 // pred_check
        %p128 = pneg %p29
      $region26: #{feature_extractor_forward.1} parent=23 // pred_check_branch
        %130 = sbr.rel (%p128) target = $region28
      $region27: #{feature_extractor_forward.1} parent=23 // pred_region
        %p131 = scmp.lt.s32.totalorder %s9, 1
        %s132 = scalar_select %p131, %s9, 1
        %s133 = smul.addr %s132, 2
        %s134 = smul.addr %s133, 4
        %s135 = scalar_lea.vmem %s0, %s134
      $region28: #{feature_extractor_forward.1} parent=23 // pred_fallthru
        _
    $region24: #{feature_extractor_forward.1} parent=5 // pred_fallthru
      _
    %p136 = scmp.le.s32.totalorder 1, %s9
    %p137 = scmp.lt.s32.totalorder %s9, 3
    %p138 = pnand %p136, %p137
    %p139 = pneg %p138
    // Predicated region
    $region29: #{feature_extractor_forward.1} parent=5 // pred_check
      _
    $region30: #{feature_extractor_forward.1} parent=5 // pred_check_branch
      %141 = sbr.rel (%p138) target = $region32
    $region31: #{feature_extractor_forward.1} parent=5 // pred_region
      %s142 = ssub.s32 %s9, 1
      %p143 = scmp.lt.s32.totalorder %s14, 1
      %s144 = scalar_select %p143, %s14, 1
      %s145 = smul.addr %s144, 2
      %s146 = smul.addr %s145, 4
      %s147 = scalar_lea.vmem %s0, %s146
      %p148 = pneg %p35
      %p149 = pneg %p32
      %p150 = pneg %p56
      %p151 = pneg %p53
      %p152 = pneg %p77
      %p153 = pneg %p74
      %p154 = pneg %p103
      %p155 = pneg %p100
      %s156 = smul.u32 2, %s14
      %p157 = scmp.lt.s32.totalorder %s156, 3
      %s158 = scalar_select %p157, %s156, 3
      %s159 = smul.addr %s158, 8
      %s160 = scalar_lea.vmem %s3, %s159
      %p161 = scmp.lt.s32.totalorder %s14, 1
      %s162 = scalar_select %p161, %s14, 1
      %s163 = smul.addr %s162, 2
      %s164 = smul.addr %s163, 4
      %s165 = scalar_lea.vmem %s0, %s164
      %s166 = smul.u32 2, %s14
      %p167 = scmp.lt.s32.totalorder %s166, 3
      %s168 = scalar_select %p167, %s166, 3
      %s169 = smul.addr %s168, 8
      %s170 = scalar_lea.vmem %s3, %s169
      %s171 = smul.u32 2, %s14
      %v173 = vld [vmem:[%s165] sm:$0xf]
      %v174 = vld [vmem:[%s165 + $0x4] sm:$0xf]
      %v177 = vunpack.c.l.b16 %v173
      %v178 = vunpack.c.l.b16 %v174
      %v179 = vpack.c.b16 %v178, %v177
      %v181 = vshrl.u32 %v179, 16
      %v183 = vrot.slane %v181, 7
      %v184 = vshll.u32 %v179, 16
      %v186 = vor.u32 %v183, %v184
      %vm188 = vcmask 1040384
      %vm189 = vsmask.f32 256
      %vm190 = vmand %vm188, %vm189
      %v191 = vsel %vm190, 0, %v186
      %v192 = vrot.slane %v184, 1
      %v193 = vor.u32 %v181, %v192
      %vm195 = vcmask 1047552
      %vm196 = vsmask.f32 7424
      %vm197 = vmand %vm195, %vm196
      %v198 = vsel %vm197, %v193, 0
      %199 = vrot.lane.b32.xlu0 %v179, 64
      %v200 = vpop.permute.xlu0 %199
      %vm201 = vcmask 523264
      %v204 = vsel %vm201, %v191, %v200
      %v206 = vld [vmem:[%s1] sm:$0xf]
      %v207 = vld [vmem:[%s1 + $0x4] sm:$0xf]
      %v208 = vld [vmem:[%s1 + $0x8] sm:$0xf]
      %v209 = vld [vmem:[%s1 + $0xc] sm:$0xf]
      %v210 = vld [vmem:[%s1 + $0x10] sm:$0xf]
      %v211 = vld [vmem:[%s1 + $0x14] sm:$0xf]
      %v212 = vld [vmem:[%s1 + $0x18] sm:$0xf]
      %v213 = vld [vmem:[%s1 + $0x1c] sm:$0xf]
      %v214 = vld [vmem:[%s1 + $0x20] sm:$0xf]
      %v215 = vld [vmem:[%s1 + $0x24] sm:$0xf]
      %v216 = vld [vmem:[%s1 + $0x28] sm:$0xf]
      %v217 = vld [vmem:[%s1 + $0x2c] sm:$0xf]
      %v218 = vld [vmem:[%s1 + $0x30] sm:$0xf]
      %v219 = vld [vmem:[%s1 + $0x34] sm:$0xf]
      %v220 = vld [vmem:[%s1 + $0x38] sm:$0xf]
      %v221 = vld [vmem:[%s1 + $0x3c] sm:$0xf]
      %v222 = vld [vmem:[%s1 + $0x40] sm:$0xf]
      %v223 = vld [vmem:[%s1 + $0x44] sm:$0xf]
      %v224 = vld [vmem:[%s1 + $0x48] sm:$0xf]
      %v225 = vld [vmem:[%s1 + $0x4c] sm:$0xf]
      %v226 = vld [vmem:[%s1 + $0x50] sm:$0xf]
      %v227 = vld [vmem:[%s1 + $0x54] sm:$0xf]
      %v228 = vld [vmem:[%s1 + $0x58] sm:$0xf]
      %v229 = vld [vmem:[%s1 + $0x5c] sm:$0xf]
      %v230 = vld [vmem:[%s2] sm:$0x1]
      %v232 = vlaneseq
      %v233 = vshrl.u32 %v232, 7
      %v234 = vsub.s32 0, %v233
      %v235 = vrot.slane %v230, %v234
      %v261 = vunpack.c.l.b16 %v206
      %v262 = vunpack.c.l.b16 %v207
      %v263 = vunpack.c.l.b16 %v208
      %v264 = vunpack.c.l.b16 %v209
      %v265 = vunpack.c.l.b16 %v210
      %v266 = vunpack.c.l.b16 %v211
      %v267 = vunpack.c.l.b16 %v212
      %v268 = vunpack.c.l.b16 %v213
      %v269 = vunpack.c.l.b16 %v214
      %v270 = vunpack.c.l.b16 %v215
      %v271 = vunpack.c.l.b16 %v216
      %v272 = vunpack.c.l.b16 %v217
      %v273 = vunpack.c.l.b16 %v218
      %v274 = vunpack.c.l.b16 %v219
      %v275 = vunpack.c.l.b16 %v220
      %v276 = vunpack.c.l.b16 %v221
      %v277 = vunpack.c.l.b16 %v222
      %v278 = vunpack.c.l.b16 %v223
      %v279 = vunpack.c.l.b16 %v224
      %v280 = vunpack.c.l.b16 %v225
      %v281 = vunpack.c.l.b16 %v226
      %v282 = vunpack.c.l.b16 %v227
      %v283 = vunpack.c.l.b16 %v228
      %v284 = vunpack.c.l.b16 %v229
      %v285 = vpack.c.b16 %v262, %v261
      %v286 = vpack.c.b16 %v264, %v263
      %v287 = vpack.c.b16 %v266, %v265
      %v288 = vpack.c.b16 %v268, %v267
      %v289 = vpack.c.b16 %v270, %v269
      %v290 = vpack.c.b16 %v272, %v271
      %v291 = vpack.c.b16 %v274, %v273
      %v292 = vpack.c.b16 %v276, %v275
      %v293 = vpack.c.b16 %v278, %v277
      %v294 = vpack.c.b16 %v280, %v279
      %v295 = vpack.c.b16 %v282, %v281
      %v296 = vpack.c.b16 %v284, %v283
      %v310 = vsel %vm201, %v198, 0
      %312 = vmatprep.subr.bf16.mxu0 0
      %313 = vmatpush1.bf16.msra.mxu0 %v292
      %314 = vmatprep.subr.bf16.mxu0 0
      %315 = vmatpush1.bf16.msra.mxu0 %v291
      %316 = vmatprep.subr.bf16.mxu0 0
      %317 = vmatpush1.bf16.msra.mxu0 %v290
      %318 = vmatprep.subr.bf16.mxu0 0
      %319 = vmatpush1.bf16.msra.mxu0 %v289
      %320 = vmatprep.subr.bf16.mxu0 0
      %321 = vmatpush1.bf16.msra.mxu0 %v288
      %322 = vmatprep.subr.bf16.mxu0 0
      %323 = vmatpush1.bf16.msra.mxu0 %v287
      %324 = vmatprep.subr.bf16.mxu0 0
      %325 = vmatpush1.bf16.msra.mxu0 %v286
      %326 = vmatprep.subr.bf16.mxu0 0
      %327 = vmatpush1.bf16.msra.mxu0 %v285
      %328 = vmatprep.subr.bf16.mxu0 0
      %329 = vmatpush2.bf16.msra.mxu0 0
      %330 = vmatprep.subr.bf16.mxu0 0
      %331 = vmatpush2.bf16.msra.mxu0 0
      %332 = vmatprep.subr.bf16.mxu0 0
      %333 = vmatpush2.bf16.msra.mxu0 0
      %334 = vmatprep.subr.bf16.mxu0 0
      %335 = vmatpush2.bf16.msra.mxu0 0
      %336 = vmatprep.subr.bf16.mxu0 0
      %337 = vmatpush2.bf16.msra.mxu0 %v296
      %338 = vmatprep.subr.bf16.mxu0 0
      %339 = vmatpush2.bf16.msra.mxu0 %v295
      %340 = vmatprep.subr.bf16.mxu0 0
      %341 = vmatpush2.bf16.msra.mxu0 %v294
      %342 = vmatprep.subr.bf16.mxu0 0
      %343 = vmatpush2.bf16.msra.mxu0 %v293
      %344 = vmatprep.mubr.bf16.mxu0 %v310
      %345 = vmatmul.mubr.bf16.gmra.mxu0 %v204
      %v346 = vpop.f32.mrf.mxu0
      %v347 = vadd.f32 %v235, %v346
      %v348 = vpop.f32.mrf.mxu0
      %v349 = vpop.f32.mrf.mxu0
      %v350 = vadd.f32 %v235, %v349
      %v351 = vpop.f32.mrf.mxu0
      %352 = vdwg.mxu0
      %353 = vst [vmem:[%s170] sm:$0xff] %v347
      %354 = vst [vmem:[%s170 + $0x8] sm:$0xff] %v350
      %s355 = smul.u32 2, %s14
      %p356 = scmp.lt.s32.totalorder %s355, 3
      %s357 = scalar_select %p356, %s355, 3
      %s358 = smul.addr %s357, 8
      %s359 = scalar_lea.vmem %s3, %s358
      // Predicated region
      $region33: #{feature_extractor_forward.1} parent=31 // pred_check
        %p360 = pneg %p100
      $region34: #{feature_extractor_forward.1} parent=31 // pred_check_branch
        %362 = sbr.rel (%p360) target = $region36
      $region35: #{feature_extractor_forward.1} parent=31 // pred_region
        %s363 = smul.u32 2, %s14
      $region36: #{feature_extractor_forward.1} parent=31 // pred_fallthru
        _
    $region32: #{feature_extractor_forward.1} parent=5 // pred_fallthru
      _
    %p364 = scmp.le.s32.totalorder 2, %s9
    // Predicated region
    $region37: #{feature_extractor_forward.1} parent=5 // pred_check
      %p365 = pneg %p364
    $region38: #{feature_extractor_forward.1} parent=5 // pred_check_branch
      %367 = sbr.rel (%p365) target = $region40
    $region39: #{feature_extractor_forward.1} parent=5 // pred_region
      %s368 = ssub.s32 %s9, 2
      // Predicated region
      $region41: #{feature_extractor_forward.1} parent=39 // pred_check
        %p369 = pneg %p106
      $region42: #{feature_extractor_forward.1} parent=39 // pred_check_branch
        %371 = sbr.rel (%p369) target = $region44
      $region43: #{feature_extractor_forward.1} parent=39 // pred_region
        %s372 = smul.u32 2, %s15
        %p373 = scmp.lt.s32.totalorder %s372, 3
        %s374 = scalar_select %p373, %s372, 3
        %s375 = smul.addr %s374, 8
        %s376 = scalar_lea.vmem %s3, %s375
      $region44: #{feature_extractor_forward.1} parent=39 // pred_fallthru
        _
    $region40: #{feature_extractor_forward.1} parent=5 // pred_fallthru
      _
  $region6: #{feature_extractor_forward.1} parent=0 // loop_footer
    %s13 = sadd.s32 1, %s9
  $region7: #{feature_extractor_forward.1} parent=0 // loop_footer_branch
    %8 = sbr.rel target = $region3
  $region8: #{feature_extractor_forward.1} parent=0 // loop_exit
    _

</llo_original>
